<compile_context>
chip_gen: v7x
topology: tpu7x:2x2x1
jax: 0.10.0
libtpu: 0.0.40
codegen_flags: <defaults>
</compile_context>

<pallas_src>
import numpy as np
import jax
import jax.numpy as jnp
from jax import lax
from jax.experimental import pallas as pl
from jax.experimental.pallas import tpu as pltpu


_COMPUTE_DTYPE = jnp.bfloat16     # MXU-native operand dtype
_LANE = 128
_NEG_BIG = -1e30                  # finite "-inf" for padded vocab columns


def _round_up(x: int, m: int) -> int:
    return ((x + m - 1) // m) * m


def _pick_tv(v_pad: int, target: int) -> int:
    """Largest multiple of 128 that divides v_pad and is <= target."""
    k = v_pad // _LANE
    best = 1
    for d in range(1, k + 1):
        if k % d == 0 and _LANE * d <= target:
            best = d
    return _LANE * best


# ----------------------------------------------------------------------------
# Parameter preparation (done ONCE, not per forward call).
# ----------------------------------------------------------------------------
def prepare_params(w1, b1, w2, b2, d_subs, d_audio, d_video, *,
                   compute_dtype=_COMPUTE_DTYPE):
    """Pad / split / cast the weights once.  w1: (d_in, V), w2: (V, V)."""
    d_in, V = w1.shape
    assert d_in == d_subs + d_audio + d_video
    assert w2.shape == (V, V)
    V_pad = _round_up(V, _LANE)

    splits = (d_subs, d_audio, d_video)
    offsets = (0, d_subs, d_subs + d_audio)
    w1_parts, d_pads = [], []
    for off, d in zip(offsets, splits):
        d_pad = _round_up(d, _LANE)
        part = jnp.pad(w1[off:off + d], ((0, d_pad - d), (0, V_pad - V)))
        w1_parts.append(part.astype(compute_dtype))
        d_pads.append(d_pad)

    b1_p = jnp.pad(b1, (0, V_pad - V)).reshape(1, V_pad).astype(jnp.float32)
    w2_p = jnp.pad(w2, ((0, V_pad - V), (0, V_pad - V))).astype(compute_dtype)
    # Bake the padded-vocab mask into b2: padded W2 columns are zero, so a huge
    # negative bias makes them vanish under softmax (no per-tile iota/select).
    b2_p = jnp.concatenate(
        [b2.astype(jnp.float32),
         jnp.full((V_pad - V,), _NEG_BIG, jnp.float32)]).reshape(1, V_pad)

    return dict(w1_s=w1_parts[0], w1_a=w1_parts[1], w1_v=w1_parts[2],
                b1=b1_p, w2=w2_p, b2=b2_p,
                d_subs=d_subs, d_audio=d_audio, d_video=d_video,
                d_pads=tuple(d_pads), V=V, V_pad=V_pad,
                compute_dtype=compute_dtype)


# ----------------------------------------------------------------------------
# Kernels
# ----------------------------------------------------------------------------
def _single_pass_kernel(xs_ref, xa_ref, xv_ref, w1s_ref, w1a_ref, w1v_ref,
                        b1_ref, w2_ref, b2_ref, o_ref):
    """Resident-weight path: whole W1/W2 in VMEM, 1-D grid over row tiles."""
    # First linear (three modality slabs) + ReLU.  Dropout = identity (eval).
    h = jnp.dot(xs_ref[...], w1s_ref[...], preferred_element_type=jnp.float32)
    h += jnp.dot(xa_ref[...], w1a_ref[...], preferred_element_type=jnp.float32)
    h += jnp.dot(xv_ref[...], w1v_ref[...], preferred_element_type=jnp.float32)
    h = jnp.maximum(h + b1_ref[...], 0.0)

    # Second linear + log_softmax (padded columns carry b2 = -1e30 -> exp = 0).
    z = jnp.dot(h.astype(w2_ref.dtype), w2_ref[...],
                preferred_element_type=jnp.float32) + b2_ref[...]
    m = jnp.max(z, axis=-1, keepdims=True)
    e = jnp.exp(z - m)
    lse = jnp.log(jnp.sum(e, axis=-1, keepdims=True)) + m
    o_ref[...] = (z - lse).astype(o_ref.dtype)


def _make_slab_kernel(acc_in_out: bool):
    """Hidden-slab reduction path for large V.

    If acc_in_out (f32 output), accumulate directly into the resident o_ref;
    otherwise use a separate f32 VMEM scratch accumulator.
    """

    def step(xs_ref, xa_ref, xv_ref, w1s_ref, w1a_ref, w1v_ref,
             b1_ref, w2_ref, b2_ref, o_ref, acc_ref):
        j = pl.program_id(1)

        h = jnp.dot(xs_ref[...], w1s_ref[...], preferred_element_type=jnp.float32)
        h += jnp.dot(xa_ref[...], w1a_ref[...], preferred_element_type=jnp.float32)
        h += jnp.dot(xv_ref[...], w1v_ref[...], preferred_element_type=jnp.float32)
        h = jnp.maximum(h + b1_ref[...], 0.0)

        part = jnp.dot(h.astype(w2_ref.dtype), w2_ref[...],
                       preferred_element_type=jnp.float32)

        @pl.when(j == 0)
        def _():
            acc_ref[...] = part.astype(acc_ref.dtype)

        @pl.when(j > 0)
        def _():
            acc_ref[...] += part.astype(acc_ref.dtype)

        @pl.when(j == pl.num_programs(1) - 1)
        def _():
            z = acc_ref[...].astype(jnp.float32) + b2_ref[...]
            m = jnp.max(z, axis=-1, keepdims=True)
            e = jnp.exp(z - m)
            lse = jnp.log(jnp.sum(e, axis=-1, keepdims=True)) + m
            o_ref[...] = (z - lse).astype(o_ref.dtype)

    if acc_in_out:
        def kernel(xs_ref, xa_ref, xv_ref, w1s_ref, w1a_ref, w1v_ref,
                   b1_ref, w2_ref, b2_ref, o_ref):
            step(xs_ref, xa_ref, xv_ref, w1s_ref, w1a_ref, w1v_ref,
                 b1_ref, w2_ref, b2_ref, o_ref, o_ref)
    else:
        def kernel(xs_ref, xa_ref, xv_ref, w1s_ref, w1a_ref, w1v_ref,
                   b1_ref, w2_ref, b2_ref, o_ref, acc_ref):
            step(xs_ref, xa_ref, xv_ref, w1s_ref, w1a_ref, w1v_ref,
                 b1_ref, w2_ref, b2_ref, o_ref, acc_ref)
    return kernel


# ----------------------------------------------------------------------------
# Forward wrapper
# ----------------------------------------------------------------------------
def generator_forward(subs_x, audio_x, video_x, params, *,
                      tm=256, tv_target=512,
                      resident_weight_bytes=20 << 20,
                      vmem_limit_bytes=None):
    """subs_x/audio_x/video_x: (B, S, d_*).  Returns log-probs (B, S, V)."""
    d_subs, d_audio, d_video = params['d_subs'], params['d_audio'], params['d_video']
    d_pads = params['d_pads']
    V, V_pad = params['V'], params['V_pad']
    cdt = params['compute_dtype']

    assert subs_x.shape[-1] == d_subs
    assert audio_x.shape[-1] == d_audio
    assert video_x.shape[-1] == d_video
    B, S = subs_x.shape[0], subs_x.shape[1]
    M = B * S
    out_dtype = subs_x.dtype

    # Row tile: MXU-friendly default, clamped for tiny inputs; guarantee at
    # least 2 row tiles when M >= 16 so v7x's two TensorCores can split the
    # "parallel" row axis.
    tm = max(8, min(tm, _round_up(M, 8)))
    if M >= 16 and _round_up(M, tm) // tm < 2:
        tm = max(8, _round_up((M + 1) // 2, 8))
    M_pad = _round_up(M, tm)

    def pad_x(x, d, d_pad):
        x2 = x.reshape(M, d)
        return jnp.pad(x2, ((0, M_pad - M), (0, d_pad - d))).astype(cdt)

    xs = pad_x(subs_x, d_subs, d_pads[0])
    xa = pad_x(audio_x, d_audio, d_pads[1])
    xv = pad_x(video_x, d_video, d_pads[2])

    bc = np.dtype(cdt).itemsize
    bo = np.dtype(out_dtype).itemsize
    w_bytes = (sum(d_pads) + V_pad) * V_pad * bc
    single_pass = w_bytes <= resident_weight_bytes

    if single_pass:
        # Weights resident in VMEM, fetched once; 1-D grid over row tiles.
        grid = (M_pad // tm,)
        tv = V_pad
        x_specs = [pl.BlockSpec((tm, dp), lambda i: (i, 0)) for dp in d_pads]
        w1_specs = [pl.BlockSpec((dp, V_pad), lambda i: (0, 0)) for dp in d_pads]
        b1_spec = pl.BlockSpec((1, V_pad), lambda i: (0, 0))
        w2_spec = pl.BlockSpec((V_pad, V_pad), lambda i: (0, 0))
        b2_spec = pl.BlockSpec((1, V_pad), lambda i: (0, 0))
        out_spec = pl.BlockSpec((tm, V_pad), lambda i: (i, 0))
        kernel = _single_pass_kernel
        scratch = []
        dim_sem = ("parallel",)
    else:
        # Hidden-slab reduction over j; W2 is re-streamed per row tile (ok as a
        # fallback for large V).  tv divides V_pad -> no double padding of W2.
        tv = _pick_tv(V_pad, tv_target)
        grid = (M_pad // tm, V_pad // tv)
        x_specs = [pl.BlockSpec((tm, dp), lambda i, j: (i, 0)) for dp in d_pads]
        w1_specs = [pl.BlockSpec((dp, tv), lambda i, j: (0, j)) for dp in d_pads]
        b1_spec = pl.BlockSpec((1, tv), lambda i, j: (0, j))
        w2_spec = pl.BlockSpec((tv, V_pad), lambda i, j: (j, 0))
        b2_spec = pl.BlockSpec((1, V_pad), lambda i, j: (0, 0))
        out_spec = pl.BlockSpec((tm, V_pad), lambda i, j: (i, 0))
        acc_in_out = (np.dtype(out_dtype) == np.dtype(np.float32))
        kernel = _make_slab_kernel(acc_in_out)
        scratch = [] if acc_in_out else [pltpu.VMEM((tm, V_pad), jnp.float32)]
        dim_sem = ("parallel", "arbitrary")

    if vmem_limit_bytes is None:
        hid = V_pad if single_pass else tv
        blocks = [tm * dp * bc for dp in d_pads]            # x tiles
        blocks += [dp * hid * bc for dp in d_pads]           # W1 slabs
        blocks += [hid * 4, hid * V_pad * bc, V_pad * 4]     # b1, W2, b2
        blocks += [tm * V_pad * bo]                           # out tile
        est = 2 * sum(blocks)                                 # double buffering
        est += 5 * tm * V_pad * 4                             # h/z/e temps (+acc)
        vmem_limit_bytes = int(min(max(est + (2 << 20), 16 << 20), 64 << 20))

    out = pl.pallas_call(
        kernel,
        out_shape=jax.ShapeDtypeStruct((M_pad, V_pad), out_dtype),
        grid=grid,
        in_specs=[*x_specs, *w1_specs, b1_spec, w2_spec, b2_spec],
        out_specs=out_spec,
        scratch_shapes=scratch,
        compiler_params=pltpu.CompilerParams(
            dimension_semantics=dim_sem,
            vmem_limit_bytes=vmem_limit_bytes),
    )(xs, xa, xv, params['w1_s'], params['w1_a'], params['w1_v'],
      params['b1'], params['w2'], params['b2'])

    return out[:M, :V].reshape(B, S, V)


if __name__ == "__main__":
    # Small deterministic setup:
    #   batch=2, seq=8, d_subs=128, d_audio=64, d_video=64 (d_in=256), voc=256
    B, S = 2, 8
    d_subs, d_audio, d_video = 128, 64, 64
    voc_size = 256
    d_in = d_subs + d_audio + d_video

    key = jax.random.PRNGKey(0)
    ks, ka, kv, kw1, kb1, kw2, kb2 = jax.random.split(key, 7)

    subs_x = jax.random.normal(ks, (B, S, d_subs), dtype=jnp.float32)
    audio_x = jax.random.normal(ka, (B, S, d_audio), dtype=jnp.float32)
    video_x = jax.random.normal(kv, (B, S, d_video), dtype=jnp.float32)

    # PyTorch nn.Linear(d_in, V) stores weight (V, d_in); we keep the transpose.
    w1 = jax.random.normal(kw1, (d_in, voc_size), dtype=jnp.float32) * 0.05
    b1 = jax.random.normal(kb1, (voc_size,), dtype=jnp.float32) * 0.05
    w2 = jax.random.normal(kw2, (voc_size, voc_size), dtype=jnp.float32) * 0.05
    b2 = jax.random.normal(kb2, (voc_size,), dtype=jnp.float32) * 0.05

    # Pad / cast weights ONCE.
    params = prepare_params(w1, b1, w2, b2, d_subs, d_audio, d_video)

    # Resident-weight (single-pass) path — the one exercised at this V.
    y = generator_forward(subs_x, audio_x, video_x, params)
    y = jax.block_until_ready(y)

    # Also exercise the hidden-slab fallback path (forced) for coverage.
    y2 = generator_forward(subs_x, audio_x, video_x, params,
                           resident_weight_bytes=0, tv_target=128)
    y2 = jax.block_until_ready(y2)

    # Pure-JAX f32 reference (eval mode: dropout = identity).  The kernel uses
    # bf16 MXU operands with f32 accumulation, so use a bf16-appropriate tol.
    x_ref = jnp.concatenate([subs_x, audio_x, video_x], axis=-1)
    h_ref = jnp.maximum(
        jnp.dot(x_ref, w1, precision=lax.Precision.HIGHEST) + b1, 0.0)
    z_ref = jnp.dot(h_ref, w2, precision=lax.Precision.HIGHEST) + b2
    ref = jax.nn.log_softmax(z_ref, axis=-1)

    assert y.shape == ref.shape and y2.shape == ref.shape
    err1 = float(jnp.max(jnp.abs(y - ref)))
    err2 = float(jnp.max(jnp.abs(y2 - ref)))
    assert jnp.allclose(y, ref, atol=3e-2, rtol=3e-2), f"max abs err {err1}"
    assert jnp.allclose(y2, ref, atol=3e-2, rtol=3e-2), f"max abs err {err2}"

    print("KERNEL_OK")
</pallas_src>

<mosaic_0001>
module attributes {stable_mosaic.version = 11 : i64} {
  func.func @_single_pass_kernel(%arg0: i32, %arg1: memref<8x128xbf16, #tpu.memory_space<vmem>>, %arg2: memref<8x128xbf16, #tpu.memory_space<vmem>>, %arg3: memref<8x128xbf16, #tpu.memory_space<vmem>>, %arg4: memref<128x256xbf16, #tpu.memory_space<vmem>>, %arg5: memref<128x256xbf16, #tpu.memory_space<vmem>>, %arg6: memref<128x256xbf16, #tpu.memory_space<vmem>>, %arg7: memref<1x256xf32, #tpu.memory_space<vmem>>, %arg8: memref<256x256xbf16, #tpu.memory_space<vmem>>, %arg9: memref<1x256xf32, #tpu.memory_space<vmem>>, %arg10: memref<8x256xf32, #tpu.memory_space<vmem>>) attributes {dimension_semantics = [#tpu.dimension_semantics<parallel>], iteration_bounds = array<i64: 2>, scalar_prefetch = 0 : i64, scratch_operands = 0 : i64, tpu.core_type = #tpu.core_type<tc>, window_params = [{transform_indices = @transform_0, window_bounds = array<i64: 8, 128>}, {transform_indices = @transform_1, window_bounds = array<i64: 8, 128>}, {transform_indices = @transform_2, window_bounds = array<i64: 8, 128>}, {pipeline_mode = #tpu.pipeline_mode<synchronous>, transform_indices = @transform_3, window_bounds = array<i64: 128, 256>}, {pipeline_mode = #tpu.pipeline_mode<synchronous>, transform_indices = @transform_4, window_bounds = array<i64: 128, 256>}, {pipeline_mode = #tpu.pipeline_mode<synchronous>, transform_indices = @transform_5, window_bounds = array<i64: 128, 256>}, {pipeline_mode = #tpu.pipeline_mode<synchronous>, transform_indices = @transform_6, window_bounds = array<i64: 1, 256>}, {pipeline_mode = #tpu.pipeline_mode<synchronous>, transform_indices = @transform_7, window_bounds = array<i64: 256, 256>}, {pipeline_mode = #tpu.pipeline_mode<synchronous>, transform_indices = @transform_8, window_bounds = array<i64: 1, 256>}, {transform_indices = @transform_9, window_bounds = array<i64: 8, 256>}]} {
    %c0 = arith.constant 0 : index
    %c0_0 = arith.constant 0 : index
    %0 = vector.load %arg1[%c0, %c0_0] : memref<8x128xbf16, #tpu.memory_space<vmem>>, vector<8x128xbf16>
    %c0_1 = arith.constant 0 : index
    %c0_2 = arith.constant 0 : index
    %1 = vector.load %arg4[%c0_1, %c0_2] : memref<128x256xbf16, #tpu.memory_space<vmem>>, vector<128x256xbf16>
    %cst = arith.constant dense<0.000000e+00> : vector<8x256xf32>
    %2 = tpu.matmul %0, %1, %cst {dimension_numbers = #tpu.dot_dimension_numbers<[1], [0], [0], [1], [0, 0, 1, 1], [], []>} : vector<8x128xbf16>, vector<128x256xbf16>, vector<8x256xf32> -> vector<8x256xf32>
    %c0_3 = arith.constant 0 : index
    %c0_4 = arith.constant 0 : index
    %3 = vector.load %arg2[%c0_3, %c0_4] : memref<8x128xbf16, #tpu.memory_space<vmem>>, vector<8x128xbf16>
    %c0_5 = arith.constant 0 : index
    %c0_6 = arith.constant 0 : index
    %4 = vector.load %arg5[%c0_5, %c0_6] : memref<128x256xbf16, #tpu.memory_space<vmem>>, vector<128x256xbf16>
    %cst_7 = arith.constant dense<0.000000e+00> : vector<8x256xf32>
    %5 = tpu.matmul %3, %4, %cst_7 {dimension_numbers = #tpu.dot_dimension_numbers<[1], [0], [0], [1], [0, 0, 1, 1], [], []>} : vector<8x128xbf16>, vector<128x256xbf16>, vector<8x256xf32> -> vector<8x256xf32>
    %6 = arith.addf %2, %5 : vector<8x256xf32>
    %c0_8 = arith.constant 0 : index
    %c0_9 = arith.constant 0 : index
    %7 = vector.load %arg3[%c0_8, %c0_9] : memref<8x128xbf16, #tpu.memory_space<vmem>>, vector<8x128xbf16>
    %c0_10 = arith.constant 0 : index
    %c0_11 = arith.constant 0 : index
    %8 = vector.load %arg6[%c0_10, %c0_11] : memref<128x256xbf16, #tpu.memory_space<vmem>>, vector<128x256xbf16>
    %cst_12 = arith.constant dense<0.000000e+00> : vector<8x256xf32>
    %9 = tpu.matmul %7, %8, %cst_12 {dimension_numbers = #tpu.dot_dimension_numbers<[1], [0], [0], [1], [0, 0, 1, 1], [], []>} : vector<8x128xbf16>, vector<128x256xbf16>, vector<8x256xf32> -> vector<8x256xf32>
    %10 = arith.addf %6, %9 : vector<8x256xf32>
    %c0_13 = arith.constant 0 : index
    %c0_14 = arith.constant 0 : index
    %11 = vector.load %arg7[%c0_13, %c0_14] : memref<1x256xf32, #tpu.memory_space<vmem>>, vector<1x256xf32>
    %12 = vector.broadcast %11 : vector<1x256xf32> to vector<8x256xf32>
    %13 = arith.addf %10, %12 : vector<8x256xf32>
    %cst_15 = arith.constant 0.000000e+00 : f32
    %14 = vector.broadcast %cst_15 : f32 to vector<8x256xf32>
    %15 = arith.maximumf %13, %14 : vector<8x256xf32>
    %16 = arith.truncf %15 : vector<8x256xf32> to vector<8x256xbf16>
    %c0_16 = arith.constant 0 : index
    %c0_17 = arith.constant 0 : index
    %17 = vector.load %arg8[%c0_16, %c0_17] : memref<256x256xbf16, #tpu.memory_space<vmem>>, vector<256x256xbf16>
    %cst_18 = arith.constant dense<0.000000e+00> : vector<8x256xf32>
    %18 = tpu.matmul %16, %17, %cst_18 {dimension_numbers = #tpu.dot_dimension_numbers<[1], [0], [0], [1], [0, 0, 1, 1], [], []>} : vector<8x256xbf16>, vector<256x256xbf16>, vector<8x256xf32> -> vector<8x256xf32>
    %c0_19 = arith.constant 0 : index
    %c0_20 = arith.constant 0 : index
    %19 = vector.load %arg9[%c0_19, %c0_20] : memref<1x256xf32, #tpu.memory_space<vmem>>, vector<1x256xf32>
    %20 = vector.broadcast %19 : vector<1x256xf32> to vector<8x256xf32>
    %21 = arith.addf %18, %20 : vector<8x256xf32>
    %cst_21 = arith.constant dense<0xFF800000> : vector<8xf32>
    %22 = vector.multi_reduction <maximumf>, %21, %cst_21 [1] : vector<8x256xf32> to vector<8xf32>
    %23 = vector.shape_cast %22 : vector<8xf32> to vector<8x1xf32>
    %24 = vector.broadcast %23 : vector<8x1xf32> to vector<8x256xf32>
    %25 = arith.subf %21, %24 : vector<8x256xf32>
    %26 = math.exp %25 : vector<8x256xf32>
    %cst_22 = arith.constant dense<0.000000e+00> : vector<8xf32>
    %27 = vector.multi_reduction <add>, %26, %cst_22 [1] : vector<8x256xf32> to vector<8xf32>
    %28 = vector.shape_cast %27 : vector<8xf32> to vector<8x1xf32>
    %29 = math.log %28 : vector<8x1xf32>
    %30 = arith.addf %29, %23 : vector<8x1xf32>
    %31 = vector.broadcast %30 : vector<8x1xf32> to vector<8x256xf32>
    %32 = arith.subf %21, %31 : vector<8x256xf32>
    %c0_23 = arith.constant 0 : index
    %c0_24 = arith.constant 0 : index
    %33 = vector.load %arg10[%c0_23, %c0_24] : memref<8x256xf32, #tpu.memory_space<vmem>>, vector<8x256xf32>
    tpu.vector_store %arg10[%c0_23, %c0_24], %32 {strides = array<i32>} : memref<8x256xf32, #tpu.memory_space<vmem>>, vector<8x256xf32>,
    return
  }
  func.func @transform_0(%arg0: i32) -> (i32, i32) {
    %c0_i32 = arith.constant 0 : i32
    %c0_i32_0 = arith.constant 0 : i32
    return %arg0, %c0_i32 : i32, i32
  }
  func.func @transform_1(%arg0: i32) -> (i32, i32) {
    %c0_i32 = arith.constant 0 : i32
    %c0_i32_0 = arith.constant 0 : i32
    return %arg0, %c0_i32 : i32, i32
  }
  func.func @transform_2(%arg0: i32) -> (i32, i32) {
    %c0_i32 = arith.constant 0 : i32
    %c0_i32_0 = arith.constant 0 : i32
    return %arg0, %c0_i32 : i32, i32
  }
  func.func @transform_3(%arg0: i32) -> (i32, i32) {
    %c0_i32 = arith.constant 0 : i32
    %c0_i32_0 = arith.constant 0 : i32
    %c0_i32_1 = arith.constant 0 : i32
    return %c0_i32, %c0_i32_0 : i32, i32
  }
  func.func @transform_4(%arg0: i32) -> (i32, i32) {
    %c0_i32 = arith.constant 0 : i32
    %c0_i32_0 = arith.constant 0 : i32
    %c0_i32_1 = arith.constant 0 : i32
    return %c0_i32, %c0_i32_0 : i32, i32
  }
  func.func @transform_5(%arg0: i32) -> (i32, i32) {
    %c0_i32 = arith.constant 0 : i32
    %c0_i32_0 = arith.constant 0 : i32
    %c0_i32_1 = arith.constant 0 : i32
    return %c0_i32, %c0_i32_0 : i32, i32
  }
  func.func @transform_6(%arg0: i32) -> (i32, i32) {
    %c0_i32 = arith.constant 0 : i32
    %c0_i32_0 = arith.constant 0 : i32
    %c0_i32_1 = arith.constant 0 : i32
    return %c0_i32, %c0_i32_0 : i32, i32
  }
  func.func @transform_7(%arg0: i32) -> (i32, i32) {
    %c0_i32 = arith.constant 0 : i32
    %c0_i32_0 = arith.constant 0 : i32
    %c0_i32_1 = arith.constant 0 : i32
    return %c0_i32, %c0_i32_0 : i32, i32
  }
  func.func @transform_8(%arg0: i32) -> (i32, i32) {
    %c0_i32 = arith.constant 0 : i32
    %c0_i32_0 = arith.constant 0 : i32
    %c0_i32_1 = arith.constant 0 : i32
    return %c0_i32, %c0_i32_0 : i32, i32
  }
  func.func @transform_9(%arg0: i32) -> (i32, i32) {
    %c0_i32 = arith.constant 0 : i32
    %c0_i32_0 = arith.constant 0 : i32
    return %arg0, %c0_i32 : i32, i32
  }
}

</mosaic_0001>

<llo_original>
// kernel: tpu_custom_call.1
$region0: #{tpu_custom_call.1}
  #allocation0 [shape = 'u32[]', space=smem, size = 0x4, offset = 0x4, fixed_abs, tag = 'smem constant byte address 0x4 - core index']
  #allocation1 [shape = 'u32[144,128]{1,0:T(1,128)}', space=vmem, size = 0x12000, scoped, tag = 'internal scratch']
  %s0 = inlined_call_operand.hbm [shape: bf16[16,128], index: 0, kind: input, shape index: {}]
  %s1 = inlined_call_operand.hbm [shape: bf16[16,128], index: 1, kind: input, shape index: {}]
  %s2 = inlined_call_operand.hbm [shape: bf16[16,128], index: 2, kind: input, shape index: {}]
  %s3 = inlined_call_operand.hbm [shape: bf16[128,256], index: 3, kind: input, shape index: {}]
  %s4 = inlined_call_operand.hbm [shape: bf16[128,256], index: 4, kind: input, shape index: {}]
  %s5 = inlined_call_operand.hbm [shape: bf16[128,256], index: 5, kind: input, shape index: {}]
  %s6 = inlined_call_operand.vmem [shape: f32[1,256], index: 6, kind: input, shape index: {}]
  %s7 = inlined_call_operand.hbm [shape: bf16[256,256], index: 7, kind: input, shape index: {}]
  %s8 = inlined_call_operand.vmem [shape: f32[1,256], index: 8, kind: input, shape index: {}]
  %s9 = inlined_call_operand.hbm [shape: f32[16,256], index: 9, kind: output, shape index: {}]
  %s10 = sld [smem:[#allocation0]]
  $region97: #{tpu_custom_call.1} parent=0
    _
  %s12 = ssub.s32 1, %s10
  %s13 = scalar_select 0, %s12, %s10
  $region1: #{tpu_custom_call.1} parent=0
    #allocation2 [shape = 'u8[4096]{0}', space=vmem, size = 0x1000, scoped, tag = 'input window, operand 0']
    #allocation3 [shape = 's32[2]{0}', space=sflag, size = 0x8, scoped, tag = 'scoped memory for tpu_custom_call.1']
    #allocation4 [shape = 's32[2]{0}', space=sflag, size = 0x8, scoped, tag = 'scoped memory for tpu_custom_call.1']
    #allocation5 [shape = 'u8[4096]{0}', space=vmem, size = 0x1000, scoped, tag = 'input window, operand 1']
    #allocation6 [shape = 's32[2]{0}', space=sflag, size = 0x8, scoped, tag = 'scoped memory for tpu_custom_call.1']
    #allocation7 [shape = 'u8[4096]{0}', space=vmem, size = 0x1000, scoped, tag = 'input window, operand 2']
    #allocation8 [shape = 'u8[65536]{0}', space=vmem, size = 0x10000, scoped, tag = 'input window, operand 3, single buffered']
    #allocation9 [shape = 's32[1]{0}', space=sflag, size = 0x4, scoped, tag = 'scoped memory for tpu_custom_call.1']
    #allocation10 [shape = 'u8[65536]{0}', space=vmem, size = 0x10000, scoped, tag = 'input window, operand 4, single buffered']
    #allocation11 [shape = 'u8[65536]{0}', space=vmem, size = 0x10000, scoped, tag = 'input window, operand 5, single buffered']
    #allocation12 [shape = 's32[1]{0}', space=sflag, size = 0x4, scoped, tag = 'scoped memory for tpu_custom_call.1']
    #allocation13 [shape = 'u8[131072]{0}', space=vmem, size = 0x20000, scoped, tag = 'input window, operand 7, single buffered']
    #allocation14 [shape = 'u8[16384]{0}', space=vmem, size = 0x4000, scoped, tag = 'output window, operand 0']
    %14 = vsyncpa [#allocation3], 0
    %s15 = scalar_lea.sflag [#allocation3], 1
    %16 = vsyncpa %s15, 0
    %17 = vsyncpa [#allocation6], 0
    %s18 = scalar_lea.sflag [#allocation6], 1
    %19 = vsyncpa %s18, 0
    %20 = vsyncpa [#allocation9], 0
    %21 = vsyncpa [#allocation12], 0
    %22 = vsyncpa [#allocation4], 0
    %s23 = scalar_lea.sflag [#allocation4], 1
    %24 = vsyncpa %s23, 0
    loop: start=0, step=1, limit=4
    $region2: #{tpu_custom_call.1} parent=1 // loop_pre_header
      _
    $region3: #{tpu_custom_call.1} parent=1 // loop_header
      %s26 = sphi 0, %s30
      %p27 = scmp.ge.s32.totalorder %s26, 4
      %s36 = sphi 0, %s38
      %s39 = sphi 0, %s36
      %s40 = sphi 0, %s39
      %s56 = sphi 0, %s40
      %s62 = sphi 0, %s64
      %s65 = sphi 0, %s62
      %s66 = sphi 0, %s65
      %s82 = sphi 0, %s66
      %s88 = sphi 0, %s90
      %s91 = sphi 0, %s88
      %s92 = sphi 0, %s91
      %s108 = sphi 0, %s92
      %s112 = sphi 0, %s112
      %s114 = sphi 0, %s112
      %s115 = sphi 0, %s114
      %s129 = sphi 0, %s115
      %s133 = sphi 0, %s133
      %s135 = sphi 0, %s133
      %s136 = sphi 0, %s135
      %s150 = sphi 0, %s136
      %s154 = sphi 0, %s154
      %s156 = sphi 0, %s154
      %s157 = sphi 0, %s156
      %s171 = sphi 0, %s157
      %s175 = sphi 0, %s175
      %s177 = sphi 0, %s175
      %s178 = sphi 0, %s177
      %s192 = sphi 0, %s178
      %s196 = sphi 0, %s196
      %s198 = sphi 0, %s196
      %s199 = sphi 0, %s198
      %s213 = sphi 0, %s199
      %s217 = sphi 0, %s217
      %s219 = sphi 0, %s217
      %s220 = sphi 0, %s219
      %s234 = sphi 0, %s220
      %s240 = sphi 0, %s242
      %s243 = sphi 0, %s240
      %s244 = sphi 0, %s243
      %s260 = sphi 0, %s244
    $region4: #{tpu_custom_call.1} parent=1 // loop_header_branch
      %29 = sbr.rel (%p27) target = $region8
    $region5: #{tpu_custom_call.1} parent=1 // loop_body
      %s31 = ssub.s32 %s26, 1
      %s32 = ssub.s32 %s26, 2
      %s33 = sadd.s32 %s26, 1
      %s34 = ssub.s32 %s26, %s33
      %p35 = scmp.eq.s32.totalorder %s34, 0
      %s37 = sadd.s32 %s36, 1
      %s38 = scalar_select %p35, %s36, %s37
      %p41 = pneg %p35
      %p42 = scmp.eq.s32.totalorder %s26, 1
      %p43 = por %p41, %p42
      %p44 = scmp.ne.s32.totalorder %s36, %s39
      %p45 = scmp.eq.s32.totalorder %s26, 0
      %p46 = por %p44, %p45
      %p47 = scmp.ne.s32.totalorder %s36, %s39
      %p48 = scmp.eq.s32.totalorder %s31, 1
      %p49 = por %p47, %p48
      %p50 = scmp.ne.s32.totalorder %s39, %s40
      %p51 = scmp.eq.s32.totalorder %s31, 0
      %p52 = por %p50, %p51
      %p53 = scmp.ne.s32.totalorder %s39, %s40
      %p54 = scmp.eq.s32.totalorder %s32, 1
      %p55 = por %p53, %p54
      %p57 = scmp.ne.s32.totalorder %s40, %s56
      %p58 = scmp.eq.s32.totalorder %s32, 0
      %p59 = por %p57, %p58
      %s60 = ssub.s32 %s26, %s33
      %p61 = scmp.eq.s32.totalorder %s60, 0
      %s63 = sadd.s32 %s62, 1
      %s64 = scalar_select %p61, %s62, %s63
      %p67 = pneg %p61
      %p68 = scmp.eq.s32.totalorder %s26, 1
      %p69 = por %p67, %p68
      %p70 = scmp.ne.s32.totalorder %s62, %s65
      %p71 = scmp.eq.s32.totalorder %s26, 0
      %p72 = por %p70, %p71
      %p73 = scmp.ne.s32.totalorder %s62, %s65
      %p74 = scmp.eq.s32.totalorder %s31, 1
      %p75 = por %p73, %p74
      %p76 = scmp.ne.s32.totalorder %s65, %s66
      %p77 = scmp.eq.s32.totalorder %s31, 0
      %p78 = por %p76, %p77
      %p79 = scmp.ne.s32.totalorder %s65, %s66
      %p80 = scmp.eq.s32.totalorder %s32, 1
      %p81 = por %p79, %p80
      %p83 = scmp.ne.s32.totalorder %s66, %s82
      %p84 = scmp.eq.s32.totalorder %s32, 0
      %p85 = por %p83, %p84
      %s86 = ssub.s32 %s26, %s33
      %p87 = scmp.eq.s32.totalorder %s86, 0
      %s89 = sadd.s32 %s88, 1
      %s90 = scalar_select %p87, %s88, %s89
      %p93 = pneg %p87
      %p94 = scmp.eq.s32.totalorder %s26, 1
      %p95 = por %p93, %p94
      %p96 = scmp.ne.s32.totalorder %s88, %s91
      %p97 = scmp.eq.s32.totalorder %s26, 0
      %p98 = por %p96, %p97
      %p99 = scmp.ne.s32.totalorder %s88, %s91
      %p100 = scmp.eq.s32.totalorder %s31, 1
      %p101 = por %p99, %p100
      %p102 = scmp.ne.s32.totalorder %s91, %s92
      %p103 = scmp.eq.s32.totalorder %s31, 0
      %p104 = por %p102, %p103
      %p105 = scmp.ne.s32.totalorder %s91, %s92
      %p106 = scmp.eq.s32.totalorder %s32, 1
      %p107 = por %p105, %p106
      %p109 = scmp.ne.s32.totalorder %s92, %s108
      %p110 = scmp.eq.s32.totalorder %s32, 0
      %p111 = por %p109, %p110
      %s113 = sadd.s32 %s112, 1
      %p116 = scmp.eq.s32.totalorder %s26, 1
      %p117 = scmp.ne.s32.totalorder %s112, %s114
      %p118 = scmp.eq.s32.totalorder %s26, 0
      %p119 = por %p117, %p118
      %p120 = scmp.ne.s32.totalorder %s112, %s114
      %p121 = scmp.eq.s32.totalorder %s31, 1
      %p122 = por %p120, %p121
      %p123 = scmp.ne.s32.totalorder %s114, %s115
      %p124 = scmp.eq.s32.totalorder %s31, 0
      %p125 = por %p123, %p124
      %p126 = scmp.ne.s32.totalorder %s114, %s115
      %p127 = scmp.eq.s32.totalorder %s32, 1
      %p128 = por %p126, %p127
      %p130 = scmp.ne.s32.totalorder %s115, %s129
      %p131 = scmp.eq.s32.totalorder %s32, 0
      %p132 = por %p130, %p131
      %s134 = sadd.s32 %s133, 1
      %p137 = scmp.eq.s32.totalorder %s26, 1
      %p138 = scmp.ne.s32.totalorder %s133, %s135
      %p139 = scmp.eq.s32.totalorder %s26, 0
      %p140 = por %p138, %p139
      %p141 = scmp.ne.s32.totalorder %s133, %s135
      %p142 = scmp.eq.s32.totalorder %s31, 1
      %p143 = por %p141, %p142
      %p144 = scmp.ne.s32.totalorder %s135, %s136
      %p145 = scmp.eq.s32.totalorder %s31, 0
      %p146 = por %p144, %p145
      %p147 = scmp.ne.s32.totalorder %s135, %s136
      %p148 = scmp.eq.s32.totalorder %s32, 1
      %p149 = por %p147, %p148
      %p151 = scmp.ne.s32.totalorder %s136, %s150
      %p152 = scmp.eq.s32.totalorder %s32, 0
      %p153 = por %p151, %p152
      %s155 = sadd.s32 %s154, 1
      %p158 = scmp.eq.s32.totalorder %s26, 1
      %p159 = scmp.ne.s32.totalorder %s154, %s156
      %p160 = scmp.eq.s32.totalorder %s26, 0
      %p161 = por %p159, %p160
      %p162 = scmp.ne.s32.totalorder %s154, %s156
      %p163 = scmp.eq.s32.totalorder %s31, 1
      %p164 = por %p162, %p163
      %p165 = scmp.ne.s32.totalorder %s156, %s157
      %p166 = scmp.eq.s32.totalorder %s31, 0
      %p167 = por %p165, %p166
      %p168 = scmp.ne.s32.totalorder %s156, %s157
      %p169 = scmp.eq.s32.totalorder %s32, 1
      %p170 = por %p168, %p169
      %p172 = scmp.ne.s32.totalorder %s157, %s171
      %p173 = scmp.eq.s32.totalorder %s32, 0
      %p174 = por %p172, %p173
      %s176 = sadd.s32 %s175, 1
      %p179 = scmp.eq.s32.totalorder %s26, 1
      %p180 = scmp.ne.s32.totalorder %s175, %s177
      %p181 = scmp.eq.s32.totalorder %s26, 0
      %p182 = por %p180, %p181
      %p183 = scmp.ne.s32.totalorder %s175, %s177
      %p184 = scmp.eq.s32.totalorder %s31, 1
      %p185 = por %p183, %p184
      %p186 = scmp.ne.s32.totalorder %s177, %s178
      %p187 = scmp.eq.s32.totalorder %s31, 0
      %p188 = por %p186, %p187
      %p189 = scmp.ne.s32.totalorder %s177, %s178
      %p190 = scmp.eq.s32.totalorder %s32, 1
      %p191 = por %p189, %p190
      %p193 = scmp.ne.s32.totalorder %s178, %s192
      %p194 = scmp.eq.s32.totalorder %s32, 0
      %p195 = por %p193, %p194
      %s197 = sadd.s32 %s196, 1
      %p200 = scmp.eq.s32.totalorder %s26, 1
      %p201 = scmp.ne.s32.totalorder %s196, %s198
      %p202 = scmp.eq.s32.totalorder %s26, 0
      %p203 = por %p201, %p202
      %p204 = scmp.ne.s32.totalorder %s196, %s198
      %p205 = scmp.eq.s32.totalorder %s31, 1
      %p206 = por %p204, %p205
      %p207 = scmp.ne.s32.totalorder %s198, %s199
      %p208 = scmp.eq.s32.totalorder %s31, 0
      %p209 = por %p207, %p208
      %p210 = scmp.ne.s32.totalorder %s198, %s199
      %p211 = scmp.eq.s32.totalorder %s32, 1
      %p212 = por %p210, %p211
      %p214 = scmp.ne.s32.totalorder %s199, %s213
      %p215 = scmp.eq.s32.totalorder %s32, 0
      %p216 = por %p214, %p215
      %s218 = sadd.s32 %s217, 1
      %p221 = scmp.eq.s32.totalorder %s26, 1
      %p222 = scmp.ne.s32.totalorder %s217, %s219
      %p223 = scmp.eq.s32.totalorder %s26, 0
      %p224 = por %p222, %p223
      %p225 = scmp.ne.s32.totalorder %s217, %s219
      %p226 = scmp.eq.s32.totalorder %s31, 1
      %p227 = por %p225, %p226
      %p228 = scmp.ne.s32.totalorder %s219, %s220
      %p229 = scmp.eq.s32.totalorder %s31, 0
      %p230 = por %p228, %p229
      %p231 = scmp.ne.s32.totalorder %s219, %s220
      %p232 = scmp.eq.s32.totalorder %s32, 1
      %p233 = por %p231, %p232
      %p235 = scmp.ne.s32.totalorder %s220, %s234
      %p236 = scmp.eq.s32.totalorder %s32, 0
      %p237 = por %p235, %p236
      %s238 = ssub.s32 %s26, %s33
      %p239 = scmp.eq.s32.totalorder %s238, 0
      %s241 = sadd.s32 %s240, 1
      %s242 = scalar_select %p239, %s240, %s241
      %p245 = pneg %p239
      %p246 = scmp.eq.s32.totalorder %s26, 1
      %p247 = por %p245, %p246
      %p248 = scmp.ne.s32.totalorder %s240, %s243
      %p249 = scmp.eq.s32.totalorder %s26, 0
      %p250 = por %p248, %p249
      %p251 = scmp.ne.s32.totalorder %s240, %s243
      %p252 = scmp.eq.s32.totalorder %s31, 1
      %p253 = por %p251, %p252
      %p254 = scmp.ne.s32.totalorder %s243, %s244
      %p255 = scmp.eq.s32.totalorder %s31, 0
      %p256 = por %p254, %p255
      %p257 = scmp.ne.s32.totalorder %s243, %s244
      %p258 = scmp.eq.s32.totalorder %s32, 1
      %p259 = por %p257, %p258
      %p261 = scmp.ne.s32.totalorder %s244, %s260
      %p262 = scmp.eq.s32.totalorder %s32, 0
      %p263 = por %p261, %p262
      %p264 = scmp.le.s32.totalorder 1, %s26
      %p265 = scmp.lt.s32.totalorder %s26, 3
      %p266 = pnand %p264, %p265
      %p267 = pneg %p266
      // Predicated region
      $region9: #{tpu_custom_call.1} parent=5 // pred_check
        _
      $region10: #{tpu_custom_call.1} parent=5 // pred_check_branch
        %269 = sbr.rel (%p266) target = $region12
      $region11: #{tpu_custom_call.1} parent=5 // pred_region
        %s270 = ssub.s32 %s26, 1
        // Predicated region
        $region13: #{tpu_custom_call.1} parent=11 // pred_check
          %p271 = pneg %p125
        $region14: #{tpu_custom_call.1} parent=11 // pred_check_branch
          %273 = sbr.rel (%p271) target = $region16
        $region15: #{tpu_custom_call.1} parent=11 // pred_region
          %s275 = ssub.s32 2048, 2048
          %276 = vsyncadd [#allocation9], %s275
          %s277 = sshll.u32 [#allocation8], 4
          %s278 = int_to_ptr.vmem [resolvable:$true] %s277
          %283 = dma.hbm_to_vmem [thread:$0]  %s3, 2048, %s278, [#allocation9], 128, 128, 8
        $region16: #{tpu_custom_call.1} parent=11 // pred_fallthru
          _
        // Predicated region
        $region17: #{tpu_custom_call.1} parent=11 // pred_check
          %p284 = pneg %p146
        $region18: #{tpu_custom_call.1} parent=11 // pred_check_branch
          %286 = sbr.rel (%p284) target = $region20
        $region19: #{tpu_custom_call.1} parent=11 // pred_region
          %s288 = ssub.s32 2048, 2048
          %289 = vsyncadd [#allocation9], %s288
          %s290 = sshll.u32 [#allocation10], 4
          %s291 = int_to_ptr.vmem [resolvable:$true] %s290
          %296 = dma.hbm_to_vmem [thread:$0]  %s4, 2048, %s291, [#allocation9], 128, 128, 8
        $region20: #{tpu_custom_call.1} parent=11 // pred_fallthru
          _
        // Predicated region
        $region21: #{tpu_custom_call.1} parent=11 // pred_check
          %p297 = pneg %p167
        $region22: #{tpu_custom_call.1} parent=11 // pred_check_branch
          %299 = sbr.rel (%p297) target = $region24
        $region23: #{tpu_custom_call.1} parent=11 // pred_region
          %s301 = ssub.s32 2048, 2048
          %302 = vsyncadd [#allocation12], %s301
          %s303 = sshll.u32 [#allocation11], 4
          %s304 = int_to_ptr.vmem [resolvable:$true] %s303
          %309 = dma.hbm_to_vmem [thread:$0]  %s5, 2048, %s304, [#allocation12], 128, 128, 8
        $region24: #{tpu_custom_call.1} parent=11 // pred_fallthru
          _
        // Predicated region
        $region25: #{tpu_custom_call.1} parent=11 // pred_check
          %p310 = pneg %p188
        $region26: #{tpu_custom_call.1} parent=11 // pred_check_branch
          %312 = sbr.rel (%p310) target = $region28
        $region27: #{tpu_custom_call.1} parent=11 // pred_region
          _
        $region28: #{tpu_custom_call.1} parent=11 // pred_fallthru
          _
        // Predicated region
        $region29: #{tpu_custom_call.1} parent=11 // pred_check
          %p313 = pneg %p209
        $region30: #{tpu_custom_call.1} parent=11 // pred_check_branch
          %315 = sbr.rel (%p313) target = $region32
        $region31: #{tpu_custom_call.1} parent=11 // pred_region
          %s317 = ssub.s32 4096, 4096
          %318 = vsyncadd [#allocation12], %s317
          %s319 = sshll.u32 [#allocation13], 4
          %s320 = int_to_ptr.vmem [resolvable:$true] %s319
          %325 = dma.hbm_to_vmem [thread:$0]  %s7, 4096, %s320, [#allocation12], 128, 128, 8
        $region32: #{tpu_custom_call.1} parent=11 // pred_fallthru
          _
        // Predicated region
        $region33: #{tpu_custom_call.1} parent=11 // pred_check
          %p326 = pneg %p230
        $region34: #{tpu_custom_call.1} parent=11 // pred_check_branch
          %328 = sbr.rel (%p326) target = $region36
        $region35: #{tpu_custom_call.1} parent=11 // pred_region
          _
        $region36: #{tpu_custom_call.1} parent=11 // pred_fallthru
          _
      $region12: #{tpu_custom_call.1} parent=5 // pred_fallthru
        _
      %p329 = scmp.lt.s32.totalorder %s26, 2
      // Predicated region
      $region37: #{tpu_custom_call.1} parent=5 // pred_check
        %p330 = pneg %p329
      $region38: #{tpu_custom_call.1} parent=5 // pred_check_branch
        %332 = sbr.rel (%p330) target = $region40
      $region39: #{tpu_custom_call.1} parent=5 // pred_region
        // Predicated region
        $region41: #{tpu_custom_call.1} parent=39 // pred_check
          %p333 = pneg %p46
        $region42: #{tpu_custom_call.1} parent=39 // pred_check_branch
          %335 = sbr.rel (%p333) target = $region44
        $region43: #{tpu_custom_call.1} parent=39 // pred_region
          %s336 = sand.u32 %s36, 1
          %s337 = scalar_lea.sflag [#allocation3], %s336
          %s338 = sand.u32 %s36, 1
          %s339 = smul.addr %s338, 4
          %s340 = scalar_lea.vmem [#allocation2], %s339
          %s342 = ssub.s32 64, 64
          %343 = vsyncadd %s337, %s342
          %s344 = smul.addr %s26, 64
          %s345 = scalar_lea.hbm %s0, %s344
          %s347 = sshll.u32 %s340, 4
          %s348 = int_to_ptr.vmem [resolvable:$true] %s347
          %350 = dma.hbm_to_vmem [thread:$0]  %s345, 64, %s348, %s337
        $region44: #{tpu_custom_call.1} parent=39 // pred_fallthru
          _
        // Predicated region
        $region45: #{tpu_custom_call.1} parent=39 // pred_check
          %p351 = pneg %p72
        $region46: #{tpu_custom_call.1} parent=39 // pred_check_branch
          %353 = sbr.rel (%p351) target = $region48
        $region47: #{tpu_custom_call.1} parent=39 // pred_region
          %s354 = sand.u32 %s26, 1
          %s355 = scalar_lea.sflag [#allocation6], %s354
          %s356 = sand.u32 %s62, 1
          %s357 = smul.addr %s356, 4
          %s358 = scalar_lea.vmem [#allocation5], %s357
          %s360 = ssub.s32 64, 64
          %361 = vsyncadd %s355, %s360
          %s362 = smul.addr %s26, 64
          %s363 = scalar_lea.hbm %s1, %s362
          %s365 = sshll.u32 %s358, 4
          %s366 = int_to_ptr.vmem [resolvable:$true] %s365
          %368 = dma.hbm_to_vmem [thread:$0]  %s363, 64, %s366, %s355
        $region48: #{tpu_custom_call.1} parent=39 // pred_fallthru
          _
        // Predicated region
        $region49: #{tpu_custom_call.1} parent=39 // pred_check
          %p369 = pneg %p98
        $region50: #{tpu_custom_call.1} parent=39 // pred_check_branch
          %371 = sbr.rel (%p369) target = $region52
        $region51: #{tpu_custom_call.1} parent=39 // pred_region
          %s372 = sand.u32 %s26, 1
          %s373 = scalar_lea.sflag [#allocation6], %s372
          %s374 = sand.u32 %s88, 1
          %s375 = smul.addr %s374, 4
          %s376 = scalar_lea.vmem [#allocation7], %s375
          %s378 = ssub.s32 64, 64
          %379 = vsyncadd %s373, %s378
          %s380 = smul.addr %s26, 64
          %s381 = scalar_lea.hbm %s2, %s380
          %s383 = sshll.u32 %s376, 4
          %s384 = int_to_ptr.vmem [resolvable:$true] %s383
          %386 = dma.hbm_to_vmem [thread:$0]  %s381, 64, %s384, %s373
        $region52: #{tpu_custom_call.1} parent=39 // pred_fallthru
          _
      $region40: #{tpu_custom_call.1} parent=5 // pred_fallthru
        _
      %p387 = scmp.le.s32.totalorder 1, %s26
      %p388 = scmp.lt.s32.totalorder %s26, 3
      %p389 = pnand %p387, %p388
      %p390 = pneg %p389
      // Predicated region
      $region53: #{tpu_custom_call.1} parent=5 // pred_check
        _
      $region54: #{tpu_custom_call.1} parent=5 // pred_check_branch
        %392 = sbr.rel (%p389) target = $region56
      $region55: #{tpu_custom_call.1} parent=5 // pred_region
        %s393 = ssub.s32 %s26, 1
        %s394 = sand.u32 %s39, 1
        %s395 = scalar_lea.sflag [#allocation3], %s394
        %s396 = sand.u32 %s39, 1
        %s397 = smul.addr %s396, 4
        %s398 = scalar_lea.vmem [#allocation2], %s397
        // Predicated region
        $region57: #{tpu_custom_call.1} parent=55 // pred_check
          %p399 = pneg %p52
        $region58: #{tpu_custom_call.1} parent=55 // pred_check_branch
          %401 = sbr.rel (%p399) target = $region60
        $region59: #{tpu_custom_call.1} parent=55 // pred_region
          %402 = dma.done %s395, 64
        $region60: #{tpu_custom_call.1} parent=55 // pred_fallthru
          _
        %s403 = sand.u32 %s31, 1
        %s404 = scalar_lea.sflag [#allocation6], %s403
        %s405 = sand.u32 %s65, 1
        %s406 = smul.addr %s405, 4
        %s407 = scalar_lea.vmem [#allocation5], %s406
        // Predicated region
        $region61: #{tpu_custom_call.1} parent=55 // pred_check
          %p408 = pneg %p78
        $region62: #{tpu_custom_call.1} parent=55 // pred_check_branch
          %410 = sbr.rel (%p408) target = $region64
        $region63: #{tpu_custom_call.1} parent=55 // pred_region
          %411 = dma.done %s404, 64
        $region64: #{tpu_custom_call.1} parent=55 // pred_fallthru
          _
        %s412 = sand.u32 %s31, 1
        %s413 = scalar_lea.sflag [#allocation6], %s412
        %s414 = sand.u32 %s91, 1
        %s415 = smul.addr %s414, 4
        %s416 = scalar_lea.vmem [#allocation7], %s415
        // Predicated region
        $region65: #{tpu_custom_call.1} parent=55 // pred_check
          %p417 = pneg %p104
        $region66: #{tpu_custom_call.1} parent=55 // pred_check_branch
          %419 = sbr.rel (%p417) target = $region68
        $region67: #{tpu_custom_call.1} parent=55 // pred_region
          %420 = dma.done %s413, 64
        $region68: #{tpu_custom_call.1} parent=55 // pred_fallthru
          _
        // Predicated region
        $region69: #{tpu_custom_call.1} parent=55 // pred_check
          %p421 = pneg %p125
        $region70: #{tpu_custom_call.1} parent=55 // pred_check_branch
          %423 = sbr.rel (%p421) target = $region72
        $region71: #{tpu_custom_call.1} parent=55 // pred_region
          %424 = dma.done [#allocation9], 2048
        $region72: #{tpu_custom_call.1} parent=55 // pred_fallthru
          _
        // Predicated region
        $region73: #{tpu_custom_call.1} parent=55 // pred_check
          %p425 = pneg %p146
        $region74: #{tpu_custom_call.1} parent=55 // pred_check_branch
          %427 = sbr.rel (%p425) target = $region76
        $region75: #{tpu_custom_call.1} parent=55 // pred_region
          %428 = dma.done [#allocation9], 2048
        $region76: #{tpu_custom_call.1} parent=55 // pred_fallthru
          _
        // Predicated region
        $region77: #{tpu_custom_call.1} parent=55 // pred_check
          %p429 = pneg %p167
        $region78: #{tpu_custom_call.1} parent=55 // pred_check_branch
          %431 = sbr.rel (%p429) target = $region80
        $region79: #{tpu_custom_call.1} parent=55 // pred_region
          %432 = dma.done [#allocation12], 2048
        $region80: #{tpu_custom_call.1} parent=55 // pred_fallthru
          _
        // Predicated region
        $region81: #{tpu_custom_call.1} parent=55 // pred_check
          %p433 = pneg %p209
        $region82: #{tpu_custom_call.1} parent=55 // pred_check_branch
          %435 = sbr.rel (%p433) target = $region84
        $region83: #{tpu_custom_call.1} parent=55 // pred_region
          %436 = dma.done [#allocation12], 4096
        $region84: #{tpu_custom_call.1} parent=55 // pred_fallthru
          _
        %s437 = sand.u32 %s39, 1
        %s438 = scalar_lea.sflag [#allocation3], %s437
        %s439 = sand.u32 %s39, 1
        %s440 = smul.addr %s439, 4
        %s441 = scalar_lea.vmem [#allocation2], %s440
        %p442 = pneg %p52
        %p443 = pneg %p49
        %s444 = sand.u32 %s31, 1
        %s445 = scalar_lea.sflag [#allocation6], %s444
        %s446 = sand.u32 %s65, 1
        %s447 = smul.addr %s446, 4
        %s448 = scalar_lea.vmem [#allocation5], %s447
        %p449 = pneg %p78
        %p450 = pneg %p75
        %s451 = sand.u32 %s31, 1
        %s452 = scalar_lea.sflag [#allocation6], %s451
        %s453 = sand.u32 %s91, 1
        %s454 = smul.addr %s453, 4
        %s455 = scalar_lea.vmem [#allocation7], %s454
        %p456 = pneg %p104
        %p457 = pneg %p101
        %p458 = pneg %p125
        %p459 = pneg %p122
        %p460 = pneg %p146
        %p461 = pneg %p143
        %p462 = pneg %p167
        %p463 = pneg %p164
        %p464 = pneg %p188
        %p465 = pneg %p185
        %p466 = pneg %p209
        %p467 = pneg %p206
        %p468 = pneg %p230
        %p469 = pneg %p227
        %p470 = pneg %p256
        %p471 = pneg %p253
        %s472 = sand.u32 %s243, 1
        %s473 = scalar_lea.sflag [#allocation4], %s472
        %s474 = sand.u32 %s243, 1
        %s475 = smul.addr %s474, 16
        %s476 = scalar_lea.vmem [#allocation14], %s475
        %v478 = vld [vmem:[%s398] sm:$0xf]
        %v479 = vld [vmem:[#allocation8] sm:$0xff]
        %v480 = vld [vmem:[#allocation8 + $0x8] sm:$0xff]
        %v481 = vld [vmem:[#allocation8 + $0x10] sm:$0xff]
        %v482 = vld [vmem:[#allocation8 + $0x18] sm:$0xff]
        %v483 = vld [vmem:[#allocation8 + $0x20] sm:$0xff]
        %v484 = vld [vmem:[#allocation8 + $0x28] sm:$0xff]
        %v485 = vld [vmem:[#allocation8 + $0x30] sm:$0xff]
        %v486 = vld [vmem:[#allocation8 + $0x38] sm:$0xff]
        %v487 = vld [vmem:[#allocation8 + $0x40] sm:$0xff]
        %v488 = vld [vmem:[#allocation8 + $0x48] sm:$0xff]
        %v489 = vld [vmem:[#allocation8 + $0x50] sm:$0xff]
        %v490 = vld [vmem:[#allocation8 + $0x58] sm:$0xff]
        %v491 = vld [vmem:[#allocation8 + $0x60] sm:$0xff]
        %v492 = vld [vmem:[#allocation8 + $0x68] sm:$0xff]
        %v493 = vld [vmem:[#allocation8 + $0x70] sm:$0xff]
        %v494 = vld [vmem:[#allocation8 + $0x78] sm:$0xff]
        %v495 = vld [vmem:[%s407] sm:$0xf]
        %v496 = vld [vmem:[#allocation10] sm:$0xff]
        %v497 = vld [vmem:[#allocation10 + $0x8] sm:$0xff]
        %v498 = vld [vmem:[#allocation10 + $0x10] sm:$0xff]
        %v499 = vld [vmem:[#allocation10 + $0x18] sm:$0xff]
        %v500 = vld [vmem:[#allocation10 + $0x20] sm:$0xff]
        %v501 = vld [vmem:[#allocation10 + $0x28] sm:$0xff]
        %v502 = vld [vmem:[#allocation10 + $0x30] sm:$0xff]
        %v503 = vld [vmem:[#allocation10 + $0x38] sm:$0xff]
        %v504 = vld [vmem:[#allocation10 + $0x40] sm:$0xff]
        %v505 = vld [vmem:[#allocation10 + $0x48] sm:$0xff]
        %v506 = vld [vmem:[#allocation10 + $0x50] sm:$0xff]
        %v507 = vld [vmem:[#allocation10 + $0x58] sm:$0xff]
        %v508 = vld [vmem:[#allocation10 + $0x60] sm:$0xff]
        %v509 = vld [vmem:[#allocation10 + $0x68] sm:$0xff]
        %v510 = vld [vmem:[#allocation10 + $0x70] sm:$0xff]
        %v511 = vld [vmem:[#allocation10 + $0x78] sm:$0xff]
        %v528 = vunpack.c.l.b16 %v496
        %v529 = vunpack.c.h.b16 %v496
        %v530 = vunpack.c.l.b16 %v497
        %v531 = vunpack.c.h.b16 %v497
        %v532 = vunpack.c.l.b16 %v498
        %v533 = vunpack.c.h.b16 %v498
        %v534 = vunpack.c.l.b16 %v499
        %v535 = vunpack.c.h.b16 %v499
        %v536 = vunpack.c.l.b16 %v500
        %v537 = vunpack.c.h.b16 %v500
        %v538 = vunpack.c.l.b16 %v501
        %v539 = vunpack.c.h.b16 %v501
        %v540 = vunpack.c.l.b16 %v502
        %v541 = vunpack.c.h.b16 %v502
        %v542 = vunpack.c.l.b16 %v503
        %v543 = vunpack.c.h.b16 %v503
        %v544 = vunpack.c.l.b16 %v504
        %v545 = vunpack.c.h.b16 %v504
        %v546 = vunpack.c.l.b16 %v505
        %v547 = vunpack.c.h.b16 %v505
        %v548 = vunpack.c.l.b16 %v506
        %v549 = vunpack.c.h.b16 %v506
        %v550 = vunpack.c.l.b16 %v507
        %v551 = vunpack.c.h.b16 %v507
        %v552 = vunpack.c.l.b16 %v508
        %v553 = vunpack.c.h.b16 %v508
        %v554 = vunpack.c.l.b16 %v509
        %v555 = vunpack.c.h.b16 %v509
        %v556 = vunpack.c.l.b16 %v510
        %v557 = vunpack.c.h.b16 %v510
        %v558 = vunpack.c.l.b16 %v511
        %v559 = vunpack.c.h.b16 %v511
        %v560 = vpack.c.b16 %v530, %v528
        %v561 = vpack.c.b16 %v531, %v529
        %v562 = vpack.c.b16 %v534, %v532
        %v563 = vpack.c.b16 %v535, %v533
        %v564 = vpack.c.b16 %v538, %v536
        %v565 = vpack.c.b16 %v539, %v537
        %v566 = vpack.c.b16 %v542, %v540
        %v567 = vpack.c.b16 %v543, %v541
        %v568 = vpack.c.b16 %v546, %v544
        %v569 = vpack.c.b16 %v547, %v545
        %v570 = vpack.c.b16 %v550, %v548
        %v571 = vpack.c.b16 %v551, %v549
        %v572 = vpack.c.b16 %v554, %v552
        %v573 = vpack.c.b16 %v555, %v553
        %v574 = vpack.c.b16 %v558, %v556
        %v575 = vpack.c.b16 %v559, %v557
        %592 = vmatprep.subr.bf16.mxu0 %v561
        %593 = vmatpush1.bf16.msra.mxu0 %v560
        %594 = vmatprep.subr.bf16.mxu0 %v563
        %595 = vmatpush1.bf16.msra.mxu0 %v562
        %596 = vmatprep.subr.bf16.mxu0 %v565
        %597 = vmatpush1.bf16.msra.mxu0 %v564
        %598 = vmatprep.subr.bf16.mxu0 %v567
        %599 = vmatpush1.bf16.msra.mxu0 %v566
        %600 = vmatprep.subr.bf16.mxu0 %v569
        %601 = vmatpush1.bf16.msra.mxu0 %v568
        %602 = vmatprep.subr.bf16.mxu0 %v571
        %603 = vmatpush1.bf16.msra.mxu0 %v570
        %604 = vmatprep.subr.bf16.mxu0 %v573
        %605 = vmatpush1.bf16.msra.mxu0 %v572
        %606 = vmatprep.subr.bf16.mxu0 %v575
        %607 = vmatpush1.bf16.msra.mxu0 %v574
        %608 = vmatprep.subr.bf16.mxu0 0
        %609 = vmatpush1.bf16.msra.mxu0 0
        %610 = vmatprep.subr.bf16.mxu0 0
        %611 = vmatpush1.bf16.msra.mxu0 0
        %612 = vmatprep.subr.bf16.mxu0 0
        %613 = vmatpush1.bf16.msra.mxu0 0
        %614 = vmatprep.subr.bf16.mxu0 0
        %615 = vmatpush1.bf16.msra.mxu0 0
        %616 = vmatprep.subr.bf16.mxu0 0
        %617 = vmatpush1.bf16.msra.mxu0 0
        %618 = vmatprep.subr.bf16.mxu0 0
        %619 = vmatpush1.bf16.msra.mxu0 0
        %620 = vmatprep.subr.bf16.mxu0 0
        %621 = vmatpush1.bf16.msra.mxu0 0
        %622 = vmatprep.subr.bf16.mxu0 0
        %623 = vmatpush1.bf16.msra.mxu0 0
        %624 = vmatprep.mubr.bf16.mxu0 0
        %625 = vmatmul.mubr.bf16.gmra.mrb[0].mxu0 %v495
        %v626 = vpop.f32.mrb[0].mxu0
        %v627 = vadd.f32 0.0, %v626
        %v628 = vpop.f32.mrb[0].mxu0
        %v629 = vadd.f32 0.0, %v628
        %v630 = vpop.f32.mrb[0].mxu0
        %v631 = vpop.f32.mrb[0].mxu0
        %632 = vdwg.mxu0
        %v649 = vunpack.c.l.b16 %v479
        %v650 = vunpack.c.h.b16 %v479
        %v651 = vunpack.c.l.b16 %v480
        %v652 = vunpack.c.h.b16 %v480
        %v653 = vunpack.c.l.b16 %v481
        %v654 = vunpack.c.h.b16 %v481
        %v655 = vunpack.c.l.b16 %v482
        %v656 = vunpack.c.h.b16 %v482
        %v657 = vunpack.c.l.b16 %v483
        %v658 = vunpack.c.h.b16 %v483
        %v659 = vunpack.c.l.b16 %v484
        %v660 = vunpack.c.h.b16 %v484
        %v661 = vunpack.c.l.b16 %v485
        %v662 = vunpack.c.h.b16 %v485
        %v663 = vunpack.c.l.b16 %v486
        %v664 = vunpack.c.h.b16 %v486
        %v665 = vunpack.c.l.b16 %v487
        %v666 = vunpack.c.h.b16 %v487
        %v667 = vunpack.c.l.b16 %v488
        %v668 = vunpack.c.h.b16 %v488
        %v669 = vunpack.c.l.b16 %v489
        %v670 = vunpack.c.h.b16 %v489
        %v671 = vunpack.c.l.b16 %v490
        %v672 = vunpack.c.h.b16 %v490
        %v673 = vunpack.c.l.b16 %v491
        %v674 = vunpack.c.h.b16 %v491
        %v675 = vunpack.c.l.b16 %v492
        %v676 = vunpack.c.h.b16 %v492
        %v677 = vunpack.c.l.b16 %v493
        %v678 = vunpack.c.h.b16 %v493
        %v679 = vunpack.c.l.b16 %v494
        %v680 = vunpack.c.h.b16 %v494
        %v681 = vpack.c.b16 %v651, %v649
        %v682 = vpack.c.b16 %v652, %v650
        %v683 = vpack.c.b16 %v655, %v653
        %v684 = vpack.c.b16 %v656, %v654
        %v685 = vpack.c.b16 %v659, %v657
        %v686 = vpack.c.b16 %v660, %v658
        %v687 = vpack.c.b16 %v663, %v661
        %v688 = vpack.c.b16 %v664, %v662
        %v689 = vpack.c.b16 %v667, %v665
        %v690 = vpack.c.b16 %v668, %v666
        %v691 = vpack.c.b16 %v671, %v669
        %v692 = vpack.c.b16 %v672, %v670
        %v693 = vpack.c.b16 %v675, %v673
        %v694 = vpack.c.b16 %v676, %v674
        %v695 = vpack.c.b16 %v679, %v677
        %v696 = vpack.c.b16 %v680, %v678
        %713 = vmatprep.subr.bf16.mxu0 %v682
        %714 = vmatpush1.bf16.msra.mxu0 %v681
        %715 = vmatprep.subr.bf16.mxu0 %v684
        %716 = vmatpush1.bf16.msra.mxu0 %v683
        %717 = vmatprep.subr.bf16.mxu0 %v686
        %718 = vmatpush1.bf16.msra.mxu0 %v685
        %719 = vmatprep.subr.bf16.mxu0 %v688
        %720 = vmatpush1.bf16.msra.mxu0 %v687
        %721 = vmatprep.subr.bf16.mxu0 %v690
        %722 = vmatpush1.bf16.msra.mxu0 %v689
        %723 = vmatprep.subr.bf16.mxu0 %v692
        %724 = vmatpush1.bf16.msra.mxu0 %v691
        %725 = vmatprep.subr.bf16.mxu0 %v694
        %726 = vmatpush1.bf16.msra.mxu0 %v693
        %727 = vmatprep.subr.bf16.mxu0 %v696
        %728 = vmatpush1.bf16.msra.mxu0 %v695
        %729 = vmatprep.subr.bf16.mxu0 0
        %730 = vmatpush1.bf16.msra.mxu0 0
        %731 = vmatprep.subr.bf16.mxu0 0
        %732 = vmatpush1.bf16.msra.mxu0 0
        %733 = vmatprep.subr.bf16.mxu0 0
        %734 = vmatpush1.bf16.msra.mxu0 0
        %735 = vmatprep.subr.bf16.mxu0 0
        %736 = vmatpush1.bf16.msra.mxu0 0
        %737 = vmatprep.subr.bf16.mxu0 0
        %738 = vmatpush1.bf16.msra.mxu0 0
        %739 = vmatprep.subr.bf16.mxu0 0
        %740 = vmatpush1.bf16.msra.mxu0 0
        %741 = vmatprep.subr.bf16.mxu0 0
        %742 = vmatpush1.bf16.msra.mxu0 0
        %743 = vmatprep.subr.bf16.mxu0 0
        %744 = vmatpush1.bf16.msra.mxu0 0
        %745 = vmatprep.mubr.bf16.mxu0 0
        %746 = vmatmul.mubr.bf16.gmra.mrb[0].mxu0 %v478
        %v747 = vpop.f32.mrb[0].mxu0
        %v748 = vadd.f32 %v627, %v747
        %v749 = vpop.f32.mrb[0].mxu0
        %v750 = vadd.f32 %v629, %v749
        %v751 = vpop.f32.mrb[0].mxu0
        %v752 = vpop.f32.mrb[0].mxu0
        %753 = vdwg.mxu0
        %v754 = vld [vmem:[%s416] sm:$0xf]
        %v755 = vld [vmem:[#allocation11] sm:$0xff]
        %v756 = vld [vmem:[#allocation11 + $0x8] sm:$0xff]
        %v757 = vld [vmem:[#allocation11 + $0x10] sm:$0xff]
        %v758 = vld [vmem:[#allocation11 + $0x18] sm:$0xff]
        %v759 = vld [vmem:[#allocation11 + $0x20] sm:$0xff]
        %v760 = vld [vmem:[#allocation11 + $0x28] sm:$0xff]
        %v761 = vld [vmem:[#allocation11 + $0x30] sm:$0xff]
        %v762 = vld [vmem:[#allocation11 + $0x38] sm:$0xff]
        %v763 = vld [vmem:[#allocation11 + $0x40] sm:$0xff]
        %v764 = vld [vmem:[#allocation11 + $0x48] sm:$0xff]
        %v765 = vld [vmem:[#allocation11 + $0x50] sm:$0xff]
        %v766 = vld [vmem:[#allocation11 + $0x58] sm:$0xff]
        %v767 = vld [vmem:[#allocation11 + $0x60] sm:$0xff]
        %v768 = vld [vmem:[#allocation11 + $0x68] sm:$0xff]
        %v769 = vld [vmem:[#allocation11 + $0x70] sm:$0xff]
        %v770 = vld [vmem:[#allocation11 + $0x78] sm:$0xff]
        %v787 = vunpack.c.l.b16 %v755
        %v788 = vunpack.c.h.b16 %v755
        %v789 = vunpack.c.l.b16 %v756
        %v790 = vunpack.c.h.b16 %v756
        %v791 = vunpack.c.l.b16 %v757
        %v792 = vunpack.c.h.b16 %v757
        %v793 = vunpack.c.l.b16 %v758
        %v794 = vunpack.c.h.b16 %v758
        %v795 = vunpack.c.l.b16 %v759
        %v796 = vunpack.c.h.b16 %v759
        %v797 = vunpack.c.l.b16 %v760
        %v798 = vunpack.c.h.b16 %v760
        %v799 = vunpack.c.l.b16 %v761
        %v800 = vunpack.c.h.b16 %v761
        %v801 = vunpack.c.l.b16 %v762
        %v802 = vunpack.c.h.b16 %v762
        %v803 = vunpack.c.l.b16 %v763
        %v804 = vunpack.c.h.b16 %v763
        %v805 = vunpack.c.l.b16 %v764
        %v806 = vunpack.c.h.b16 %v764
        %v807 = vunpack.c.l.b16 %v765
        %v808 = vunpack.c.h.b16 %v765
        %v809 = vunpack.c.l.b16 %v766
        %v810 = vunpack.c.h.b16 %v766
        %v811 = vunpack.c.l.b16 %v767
        %v812 = vunpack.c.h.b16 %v767
        %v813 = vunpack.c.l.b16 %v768
        %v814 = vunpack.c.h.b16 %v768
        %v815 = vunpack.c.l.b16 %v769
        %v816 = vunpack.c.h.b16 %v769
        %v817 = vunpack.c.l.b16 %v770
        %v818 = vunpack.c.h.b16 %v770
        %v819 = vpack.c.b16 %v789, %v787
        %v820 = vpack.c.b16 %v790, %v788
        %v821 = vpack.c.b16 %v793, %v791
        %v822 = vpack.c.b16 %v794, %v792
        %v823 = vpack.c.b16 %v797, %v795
        %v824 = vpack.c.b16 %v798, %v796
        %v825 = vpack.c.b16 %v801, %v799
        %v826 = vpack.c.b16 %v802, %v800
        %v827 = vpack.c.b16 %v805, %v803
        %v828 = vpack.c.b16 %v806, %v804
        %v829 = vpack.c.b16 %v809, %v807
        %v830 = vpack.c.b16 %v810, %v808
        %v831 = vpack.c.b16 %v813, %v811
        %v832 = vpack.c.b16 %v814, %v812
        %v833 = vpack.c.b16 %v817, %v815
        %v834 = vpack.c.b16 %v818, %v816
        %851 = vmatprep.subr.bf16.mxu0 %v820
        %852 = vmatpush1.bf16.msra.mxu0 %v819
        %853 = vmatprep.subr.bf16.mxu0 %v822
        %854 = vmatpush1.bf16.msra.mxu0 %v821
        %855 = vmatprep.subr.bf16.mxu0 %v824
        %856 = vmatpush1.bf16.msra.mxu0 %v823
        %857 = vmatprep.subr.bf16.mxu0 %v826
        %858 = vmatpush1.bf16.msra.mxu0 %v825
        %859 = vmatprep.subr.bf16.mxu0 %v828
        %860 = vmatpush1.bf16.msra.mxu0 %v827
        %861 = vmatprep.subr.bf16.mxu0 %v830
        %862 = vmatpush1.bf16.msra.mxu0 %v829
        %863 = vmatprep.subr.bf16.mxu0 %v832
        %864 = vmatpush1.bf16.msra.mxu0 %v831
        %865 = vmatprep.subr.bf16.mxu0 %v834
        %866 = vmatpush1.bf16.msra.mxu0 %v833
        %867 = vmatprep.subr.bf16.mxu0 0
        %868 = vmatpush1.bf16.msra.mxu0 0
        %869 = vmatprep.subr.bf16.mxu0 0
        %870 = vmatpush1.bf16.msra.mxu0 0
        %871 = vmatprep.subr.bf16.mxu0 0
        %872 = vmatpush1.bf16.msra.mxu0 0
        %873 = vmatprep.subr.bf16.mxu0 0
        %874 = vmatpush1.bf16.msra.mxu0 0
        %875 = vmatprep.subr.bf16.mxu0 0
        %876 = vmatpush1.bf16.msra.mxu0 0
        %877 = vmatprep.subr.bf16.mxu0 0
        %878 = vmatpush1.bf16.msra.mxu0 0
        %879 = vmatprep.subr.bf16.mxu0 0
        %880 = vmatpush1.bf16.msra.mxu0 0
        %881 = vmatprep.subr.bf16.mxu0 0
        %882 = vmatpush1.bf16.msra.mxu0 0
        %883 = vmatprep.mubr.bf16.mxu0 0
        %884 = vmatmul.mubr.bf16.gmra.mrb[0].mxu0 %v754
        %v885 = vpop.f32.mrb[0].mxu0
        %v886 = vadd.f32 0.0, %v885
        %v887 = vpop.f32.mrb[0].mxu0
        %v888 = vadd.f32 0.0, %v887
        %v889 = vpop.f32.mrb[0].mxu0
        %v890 = vpop.f32.mrb[0].mxu0
        %891 = vdwg.mxu0
        %v892 = vadd.f32 %v748, %v886
        %v893 = vadd.f32 %v750, %v888
        %v894 = vld [vmem:[%s6] sm:$0x3]
        %v896 = vlaneseq
        %v897 = vshrl.u32 %v896, 7
        %v898 = vsub.s32 0, %v897
        %v899 = vrot.slane %v894, %v898
        %v900 = vlaneseq
        %v901 = vshrl.u32 %v900, 7
        %v902 = vsub.s32 1, %v901
        %v903 = vrot.slane %v894, %v902
        %v906 = vadd.f32 %v892, %v899
        %v907 = vadd.f32 %v893, %v903
        %v908 = vmax.f32 %v906, 0.0
        %v909 = vmax.f32 %v907, 0.0
        %v910 = vpack.c.bf16 %v908, %v908
        %v911 = vpack.c.bf16 %v909, %v909
        %v912 = vld [vmem:[#allocation13] sm:$0xff]
        %v913 = vld [vmem:[#allocation13 + $0x8] sm:$0xff]
        %v914 = vld [vmem:[#allocation13 + $0x10] sm:$0xff]
        %v915 = vld [vmem:[#allocation13 + $0x18] sm:$0xff]
        %v916 = vld [vmem:[#allocation13 + $0x20] sm:$0xff]
        %v917 = vld [vmem:[#allocation13 + $0x28] sm:$0xff]
        %v918 = vld [vmem:[#allocation13 + $0x30] sm:$0xff]
        %v919 = vld [vmem:[#allocation13 + $0x38] sm:$0xff]
        %v920 = vld [vmem:[#allocation13 + $0x40] sm:$0xff]
        %v921 = vld [vmem:[#allocation13 + $0x48] sm:$0xff]
        %v922 = vld [vmem:[#allocation13 + $0x50] sm:$0xff]
        %v923 = vld [vmem:[#allocation13 + $0x58] sm:$0xff]
        %v924 = vld [vmem:[#allocation13 + $0x60] sm:$0xff]
        %v925 = vld [vmem:[#allocation13 + $0x68] sm:$0xff]
        %v926 = vld [vmem:[#allocation13 + $0x70] sm:$0xff]
        %v927 = vld [vmem:[#allocation13 + $0x78] sm:$0xff]
        %v928 = vld [vmem:[#allocation13 + $0x80] sm:$0xff]
        %v929 = vld [vmem:[#allocation13 + $0x88] sm:$0xff]
        %v930 = vld [vmem:[#allocation13 + $0x90] sm:$0xff]
        %v931 = vld [vmem:[#allocation13 + $0x98] sm:$0xff]
        %v932 = vld [vmem:[#allocation13 + $0xa0] sm:$0xff]
        %v933 = vld [vmem:[#allocation13 + $0xa8] sm:$0xff]
        %v934 = vld [vmem:[#allocation13 + $0xb0] sm:$0xff]
        %v935 = vld [vmem:[#allocation13 + $0xb8] sm:$0xff]
        %v936 = vld [vmem:[#allocation13 + $0xc0] sm:$0xff]
        %v937 = vld [vmem:[#allocation13 + $0xc8] sm:$0xff]
        %v938 = vld [vmem:[#allocation13 + $0xd0] sm:$0xff]
        %v939 = vld [vmem:[#allocation13 + $0xd8] sm:$0xff]
        %v940 = vld [vmem:[#allocation13 + $0xe0] sm:$0xff]
        %v941 = vld [vmem:[#allocation13 + $0xe8] sm:$0xff]
        %v942 = vld [vmem:[#allocation13 + $0xf0] sm:$0xff]
        %v943 = vld [vmem:[#allocation13 + $0xf8] sm:$0xff]
        %v944 = vld [vmem:[%s8] sm:$0x3]
        %v946 = vlaneseq
        %v947 = vshrl.u32 %v946, 7
        %v948 = vsub.s32 0, %v947
        %v949 = vrot.slane %v944, %v948
        %v950 = vlaneseq
        %v951 = vshrl.u32 %v950, 7
        %v952 = vsub.s32 1, %v951
        %v953 = vrot.slane %v944, %v952
        %v988 = vunpack.c.l.b16 %v912
        %v989 = vunpack.c.h.b16 %v912
        %v990 = vunpack.c.l.b16 %v913
        %v991 = vunpack.c.h.b16 %v913
        %v992 = vunpack.c.l.b16 %v914
        %v993 = vunpack.c.h.b16 %v914
        %v994 = vunpack.c.l.b16 %v915
        %v995 = vunpack.c.h.b16 %v915
        %v996 = vunpack.c.l.b16 %v916
        %v997 = vunpack.c.h.b16 %v916
        %v998 = vunpack.c.l.b16 %v917
        %v999 = vunpack.c.h.b16 %v917
        %v1000 = vunpack.c.l.b16 %v918
        %v1001 = vunpack.c.h.b16 %v918
        %v1002 = vunpack.c.l.b16 %v919
        %v1003 = vunpack.c.h.b16 %v919
        %v1004 = vunpack.c.l.b16 %v920
        %v1005 = vunpack.c.h.b16 %v920
        %v1006 = vunpack.c.l.b16 %v921
        %v1007 = vunpack.c.h.b16 %v921
        %v1008 = vunpack.c.l.b16 %v922
        %v1009 = vunpack.c.h.b16 %v922
        %v1010 = vunpack.c.l.b16 %v923
        %v1011 = vunpack.c.h.b16 %v923
        %v1012 = vunpack.c.l.b16 %v924
        %v1013 = vunpack.c.h.b16 %v924
        %v1014 = vunpack.c.l.b16 %v925
        %v1015 = vunpack.c.h.b16 %v925
        %v1016 = vunpack.c.l.b16 %v926
        %v1017 = vunpack.c.h.b16 %v926
        %v1018 = vunpack.c.l.b16 %v927
        %v1019 = vunpack.c.h.b16 %v927
        %v1020 = vunpack.c.l.b16 %v928
        %v1021 = vunpack.c.h.b16 %v928
        %v1022 = vunpack.c.l.b16 %v929
        %v1023 = vunpack.c.h.b16 %v929
        %v1024 = vunpack.c.l.b16 %v930
        %v1025 = vunpack.c.h.b16 %v930
        %v1026 = vunpack.c.l.b16 %v931
        %v1027 = vunpack.c.h.b16 %v931
        %v1028 = vunpack.c.l.b16 %v932
        %v1029 = vunpack.c.h.b16 %v932
        %v1030 = vunpack.c.l.b16 %v933
        %v1031 = vunpack.c.h.b16 %v933
        %v1032 = vunpack.c.l.b16 %v934
        %v1033 = vunpack.c.h.b16 %v934
        %v1034 = vunpack.c.l.b16 %v935
        %v1035 = vunpack.c.h.b16 %v935
        %v1036 = vunpack.c.l.b16 %v936
        %v1037 = vunpack.c.h.b16 %v936
        %v1038 = vunpack.c.l.b16 %v937
        %v1039 = vunpack.c.h.b16 %v937
        %v1040 = vunpack.c.l.b16 %v938
        %v1041 = vunpack.c.h.b16 %v938
        %v1042 = vunpack.c.l.b16 %v939
        %v1043 = vunpack.c.h.b16 %v939
        %v1044 = vunpack.c.l.b16 %v940
        %v1045 = vunpack.c.h.b16 %v940
        %v1046 = vunpack.c.l.b16 %v941
        %v1047 = vunpack.c.h.b16 %v941
        %v1048 = vunpack.c.l.b16 %v942
        %v1049 = vunpack.c.h.b16 %v942
        %v1050 = vunpack.c.l.b16 %v943
        %v1051 = vunpack.c.h.b16 %v943
        %v1052 = vpack.c.b16 %v990, %v988
        %v1053 = vpack.c.b16 %v991, %v989
        %v1054 = vpack.c.b16 %v994, %v992
        %v1055 = vpack.c.b16 %v995, %v993
        %v1056 = vpack.c.b16 %v998, %v996
        %v1057 = vpack.c.b16 %v999, %v997
        %v1058 = vpack.c.b16 %v1002, %v1000
        %v1059 = vpack.c.b16 %v1003, %v1001
        %v1060 = vpack.c.b16 %v1006, %v1004
        %v1061 = vpack.c.b16 %v1007, %v1005
        %v1062 = vpack.c.b16 %v1010, %v1008
        %v1063 = vpack.c.b16 %v1011, %v1009
        %v1064 = vpack.c.b16 %v1014, %v1012
        %v1065 = vpack.c.b16 %v1015, %v1013
        %v1066 = vpack.c.b16 %v1018, %v1016
        %v1067 = vpack.c.b16 %v1019, %v1017
        %v1068 = vpack.c.b16 %v1022, %v1020
        %v1069 = vpack.c.b16 %v1023, %v1021
        %v1070 = vpack.c.b16 %v1026, %v1024
        %v1071 = vpack.c.b16 %v1027, %v1025
        %v1072 = vpack.c.b16 %v1030, %v1028
        %v1073 = vpack.c.b16 %v1031, %v1029
        %v1074 = vpack.c.b16 %v1034, %v1032
        %v1075 = vpack.c.b16 %v1035, %v1033
        %v1076 = vpack.c.b16 %v1038, %v1036
        %v1077 = vpack.c.b16 %v1039, %v1037
        %v1078 = vpack.c.b16 %v1042, %v1040
        %v1079 = vpack.c.b16 %v1043, %v1041
        %v1080 = vpack.c.b16 %v1046, %v1044
        %v1081 = vpack.c.b16 %v1047, %v1045
        %v1082 = vpack.c.b16 %v1050, %v1048
        %v1083 = vpack.c.b16 %v1051, %v1049
        %1116 = vmatprep.subr.bf16.mxu0 %v1053
        %1117 = vmatpush1.bf16.msra.mxu0 %v1052
        %1118 = vmatprep.subr.bf16.mxu0 %v1055
        %1119 = vmatpush1.bf16.msra.mxu0 %v1054
        %1120 = vmatprep.subr.bf16.mxu0 %v1057
        %1121 = vmatpush1.bf16.msra.mxu0 %v1056
        %1122 = vmatprep.subr.bf16.mxu0 %v1059
        %1123 = vmatpush1.bf16.msra.mxu0 %v1058
        %1124 = vmatprep.subr.bf16.mxu0 %v1061
        %1125 = vmatpush1.bf16.msra.mxu0 %v1060
        %1126 = vmatprep.subr.bf16.mxu0 %v1063
        %1127 = vmatpush1.bf16.msra.mxu0 %v1062
        %1128 = vmatprep.subr.bf16.mxu0 %v1065
        %1129 = vmatpush1.bf16.msra.mxu0 %v1064
        %1130 = vmatprep.subr.bf16.mxu0 %v1067
        %1131 = vmatpush1.bf16.msra.mxu0 %v1066
        %1132 = vmatprep.subr.bf16.mxu0 %v1069
        %1133 = vmatpush1.bf16.msra.mxu0 %v1068
        %1134 = vmatprep.subr.bf16.mxu0 %v1071
        %1135 = vmatpush1.bf16.msra.mxu0 %v1070
        %1136 = vmatprep.subr.bf16.mxu0 %v1073
        %1137 = vmatpush1.bf16.msra.mxu0 %v1072
        %1138 = vmatprep.subr.bf16.mxu0 %v1075
        %1139 = vmatpush1.bf16.msra.mxu0 %v1074
        %1140 = vmatprep.subr.bf16.mxu0 %v1077
        %1141 = vmatpush1.bf16.msra.mxu0 %v1076
        %1142 = vmatprep.subr.bf16.mxu0 %v1079
        %1143 = vmatpush1.bf16.msra.mxu0 %v1078
        %1144 = vmatprep.subr.bf16.mxu0 %v1081
        %1145 = vmatpush1.bf16.msra.mxu0 %v1080
        %1146 = vmatprep.subr.bf16.mxu0 %v1083
        %1147 = vmatpush1.bf16.msra.mxu0 %v1082
        %1148 = vmatprep.mubr.bf16.mxu0 %v911
        %1149 = vmatmul.mubr.bf16.gmra.mrb[0].mxu0 %v910
        %v1150 = vpop.f32.mrb[0].mxu0
        %v1151 = vadd.f32 %v949, %v1150
        %v1152 = vpop.f32.mrb[0].mxu0
        %v1153 = vadd.f32 %v953, %v1152
        %v1154 = vpop.f32.mrb[0].mxu0
        %v1155 = vpop.f32.mrb[0].mxu0
        %1156 = vdwg.mxu0
        %v1157 = vmax.f32 %v1151, %v1153
        %1158 = vmax.xlane.f32.xlu0 %v1157
        %v1159 = vpop.xlane.xlu0 %1158
        %v1160 = vsub.f32 %v1151, %v1159
        %v1161 = vsub.f32 %v1153, %v1159
        %v1162 = vmul.f32 %v1160, 1.442695
        %v1163 = vpow.pop %v1162
        %v1164 = vmul.f32 %v1161, 1.442695
        %v1165 = vpow.pop %v1164
        %v1166 = vadd.f32 %v1163, %v1165
        %1167 = vadd.xlane.f32.xlu0 %v1166
        %v1168 = vpop.xlane.xlu0 %1167
        %v1169 = vlog2.pop %v1168
        %v1170 = vmul.f32 %v1169, 0.6931472
        %v1171 = vadd.f32 %v1170, %v1159
        %v1172 = vsub.f32 %v1151, %v1171
        %v1173 = vsub.f32 %v1153, %v1171
        %1174 = vst [vmem:[%s476] sm:$0xff] %v1172
        %1175 = vst [vmem:[%s476 + $0x8] sm:$0xff] %v1173
        %s1176 = sand.u32 %s243, 1
        %s1177 = scalar_lea.sflag [#allocation4], %s1176
        %s1178 = sand.u32 %s243, 1
        %s1179 = smul.addr %s1178, 16
        %s1180 = scalar_lea.vmem [#allocation14], %s1179
        // Predicated region
        $region85: #{tpu_custom_call.1} parent=55 // pred_check
          %p1181 = pneg %p253
        $region86: #{tpu_custom_call.1} parent=55 // pred_check_branch
          %1183 = sbr.rel (%p1181) target = $region88
        $region87: #{tpu_custom_call.1} parent=55 // pred_region
          %s1185 = ssub.s32 256, 256
          %1186 = vsyncadd %s1177, %s1185
          %s1187 = smul.addr %s31, 2
          %s1188 = smul.addr %s1187, 128
          %s1189 = scalar_lea.hbm %s9, %s1188
          %s1191 = sshll.u32 %s1180, 4
          %s1192 = int_to_ptr.vmem [resolvable:$true] %s1191
          %1194 = dma.vmem_to_hbm [thread:$0]  %s1192, 256, %s1189, %s1177
        $region88: #{tpu_custom_call.1} parent=55 // pred_fallthru
          _
      $region56: #{tpu_custom_call.1} parent=5 // pred_fallthru
        _
      %p1195 = scmp.le.s32.totalorder 2, %s26
      // Predicated region
      $region89: #{tpu_custom_call.1} parent=5 // pred_check
        %p1196 = pneg %p1195
      $region90: #{tpu_custom_call.1} parent=5 // pred_check_branch
        %1198 = sbr.rel (%p1196) target = $region92
      $region91: #{tpu_custom_call.1} parent=5 // pred_region
        %s1199 = ssub.s32 %s26, 2
        // Predicated region
        $region93: #{tpu_custom_call.1} parent=91 // pred_check
          %p1200 = pneg %p259
        $region94: #{tpu_custom_call.1} parent=91 // pred_check_branch
          %1202 = sbr.rel (%p1200) target = $region96
        $region95: #{tpu_custom_call.1} parent=91 // pred_region
          %s1203 = sand.u32 %s244, 1
          %s1204 = scalar_lea.sflag [#allocation4], %s1203
          %s1205 = sand.u32 %s244, 1
          %s1206 = smul.addr %s1205, 16
          %s1207 = scalar_lea.vmem [#allocation14], %s1206
          %1208 = dma.done %s1204, 256
        $region96: #{tpu_custom_call.1} parent=91 // pred_fallthru
          _
      $region92: #{tpu_custom_call.1} parent=5 // pred_fallthru
        _
    $region6: #{tpu_custom_call.1} parent=1 // loop_footer
      %s30 = sadd.s32 1, %s26
    $region7: #{tpu_custom_call.1} parent=1 // loop_footer_branch
      %25 = sbr.rel target = $region3
    $region8: #{tpu_custom_call.1} parent=1 // loop_exit
      _
    %1209 = vsyncpa [#allocation3], 1
    %s1210 = scalar_lea.sflag [#allocation3], 1
    %1211 = vsyncpa %s1210, 1
    %1212 = vsyncpa [#allocation6], 1
    %s1213 = scalar_lea.sflag [#allocation6], 1
    %1214 = vsyncpa %s1213, 1
    %1215 = vsyncpa [#allocation9], 1
    %1216 = vsyncpa [#allocation12], 1
    %1217 = vsyncpa [#allocation4], 1
    %s1218 = scalar_lea.sflag [#allocation4], 1
    %1219 = vsyncpa %s1218, 1

</llo_original>
